<compile_context>
chip_gen: v6e
topology: v6e:2x2x1
jax: 0.10.0
libtpu: 0.0.40
codegen_flags: <defaults>
</compile_context>

<pallas_src>
import functools

import jax
import jax.numpy as jnp
from jax import lax
from jax.experimental import pallas as pl
from jax.experimental.pallas import tpu as pltpu


def _eq_layernorm_kernel(x_ref, w_ref, p_ref, o_ref, *, c_dim, eps):
    # x_ref: (TB, ACp) batch tile (lane-dense, lane-padded)
    # w_ref: (1, ACp)  per-lane affine weight (f32, zero on padded lanes)
    # p_ref: (ACp, ACp) group-averaging matrix (f32, zero on padded lanes)
    x = x_ref[...].astype(jnp.float32)
    w = w_ref[...]
    p = p_ref[...]

    # Per-(row, vector-component) mean over the hidden dim, already broadcast
    # back across its C lanes: a single (TB,ACp)x(ACp,ACp) MXU matmul instead
    # of A cross-lane (XLU) reductions + A lane broadcasts.
    mean_b = jnp.dot(x, p,
                     precision=lax.Precision.HIGHEST,
                     preferred_element_type=jnp.float32)
    centered = x - mean_b

    # field_norm = mean over hidden dim of (sum over vector dim of centered^2)
    #            = (1/C) * sum over all real lanes of centered^2   (per row).
    # Padded lanes of `centered` are exactly zero, so a matmul against an
    # all-ones matrix gives the per-row sum already lane-broadcast (no XLU
    # reduction, no lane-sparse (TB,1) intermediate).
    sq = centered * centered
    ones_mat = jnp.ones(p.shape, dtype=jnp.float32)
    sumsq_b = jnp.dot(sq, ones_mat,
                      precision=lax.Precision.HIGHEST,
                      preferred_element_type=jnp.float32)
    inv_norm = lax.rsqrt(sumsq_b * jnp.float32(1.0 / c_dim) + jnp.float32(eps))
    o_ref[...] = (centered * (inv_norm * w)).astype(o_ref.dtype)


def _sublane(itemsize: int) -> int:
    # f32 -> 8, bf16 -> 16, int8/fp8 -> 32
    return max(8, 32 // max(itemsize, 1))


def _pick_block_b(b: int, ac_pad: int, itemsize: int) -> int:
    """Pick the batch tile size TB for the (B, ACp) layout."""
    # Double-buffered in+out I/O budget per grid step (f32 worst case for the
    # in-kernel intermediates); bigger blocks amortize the ~0.35us/step cost.
    budget = 16 * 1024 * 1024
    per_row = 2 * 2 * ac_pad * max(itemsize, 4)     # in+out, double-buffered
    tb = max(budget // per_row, 16)
    tb = min(tb, 4096, b)
    # For large B keep >= ~8 grid steps so the BlockSpec double-buffer always
    # has something to prefetch on each of v7x's 2 TensorCores (>= 4 steps per
    # core), but never shrink a step below 1024 rows.
    if b >= 4096:
        tb = min(tb, max(pl.cdiv(b, 8), 1024))
    if tb < b:
        sub = _sublane(itemsize)
        tb = max(sub, (tb // sub) * sub)
    return tb


def equivariant_layer_norm(field: jax.Array, weight: jax.Array, eps: float = 1e-5,
                           *, block_b: int | None = None) -> jax.Array:
    """field: (B, A, hidden_dim); weight: (hidden_dim,). Returns (B, A, hidden_dim)."""
    b, a, c = field.shape
    assert weight.shape == (c,)
    ac = a * c
    ac_pad = ((ac + 127) // 128) * 128           # lane-dense: pad flat axis to 128
    itemsize = jnp.dtype(field.dtype).itemsize

    # Lane-dense view: flatten (A, C) into a single trailing axis (row-major,
    # no element reordering), zero-padded up to ac_pad lanes.
    x2d = field.reshape(b, ac)
    if ac_pad != ac:
        x2d = jnp.pad(x2d, ((0, 0), (0, ac_pad - ac)))

    # Per-lane affine weight: lane j of the flat layout is hidden index j % C.
    w_tiled = jnp.tile(weight.astype(jnp.float32), a)
    if ac_pad != ac:
        w_tiled = jnp.pad(w_tiled, (0, ac_pad - ac))
    w_tiled = w_tiled.reshape(1, ac_pad)

    # Group-averaging matrix: (x @ P)[:, j] = mean over the hidden dim of the
    # vector component lane j belongs to (zero on padded lanes).
    lane = jnp.arange(ac_pad, dtype=jnp.int32)
    real = lane < ac
    grp = jnp.where(real, lane // c, -1)
    p_mat = ((grp[:, None] == grp[None, :]) & real[:, None] & real[None, :])
    p_mat = p_mat.astype(jnp.float32) * jnp.float32(1.0 / c)

    if block_b is None:
        tb = _pick_block_b(b, ac_pad, itemsize)
    else:
        tb = min(int(block_b), b)
        if tb < b:
            sub = _sublane(itemsize)
            tb = max(sub, (tb // sub) * sub)

    grid = (pl.cdiv(b, tb),)
    kernel = functools.partial(_eq_layernorm_kernel, c_dim=c, eps=eps)

    # Advisory cost: memory-bound op with two small MXU matmuls per row tile.
    cost = pl.CostEstimate(
        flops=4 * b * ac_pad * ac_pad + 6 * b * ac_pad,
        transcendentals=b * ac_pad,
        bytes_accessed=2 * b * ac_pad * itemsize + ac_pad * ac_pad * 4 + ac_pad * 4,
    )

    out2d = pl.pallas_call(
        kernel,
        out_shape=jax.ShapeDtypeStruct((b, ac_pad), field.dtype),
        grid_spec=pl.GridSpec(
            grid=grid,
            in_specs=[
                pl.BlockSpec((tb, ac_pad), lambda i: (i, 0)),      # batch tile of field
                pl.BlockSpec((1, ac_pad), lambda i: (0, 0)),       # tiled weight (resident)
                pl.BlockSpec((ac_pad, ac_pad), lambda i: (0, 0)),  # group-avg matrix (resident)
            ],
            out_specs=pl.BlockSpec((tb, ac_pad), lambda i: (i, 0)),
        ),
        compiler_params=pltpu.CompilerParams(
            dimension_semantics=("parallel",),
            vmem_limit_bytes=48 * 1024 * 1024,
        ),
        cost_estimate=cost,
    )(x2d, w_tiled, p_mat)

    if ac_pad != ac:
        out2d = out2d[:, :ac]
    return out2d.reshape(b, a, c)


def _reference(field, weight, eps=1e-5):
    # Literal translation of the PyTorch forward (sanity check).
    f = jnp.transpose(field, (0, 2, 1))                            # (B, C, A)
    f = f - jnp.mean(f, axis=1, keepdims=True)
    fn = jnp.mean(jnp.sum(f * f, axis=-1), axis=1, keepdims=True)  # (B, 1)
    fn = (fn + eps) ** -0.5 * weight                               # (B, C)
    f = f * fn[:, :, None]
    return jnp.transpose(f, (0, 2, 1))                             # (B, A, C)


if __name__ == "__main__":
    key = jax.random.PRNGKey(0)
    B, A, HIDDEN = 2, 4, 32                      # 4d equivariant vectors, hidden_dim=32
    x = jax.random.normal(key, (B, A, HIDDEN), dtype=jnp.float32)

    # Parameter per module __init__: affine_weight = ones(hidden_dim)
    affine_weight = jnp.ones((HIDDEN,), dtype=jnp.float32)

    out = jax.block_until_ready(equivariant_layer_norm(x, affine_weight, eps=1e-5))
    ref = _reference(x, affine_weight, eps=1e-5)
    assert out.shape == (B, A, HIDDEN)
    assert jnp.allclose(out, ref, atol=1e-5, rtol=1e-5), "mismatch vs reference (single block)"

    # Exercise the batch-blocked path (grid > 1) with a non-trivial weight.
    kx, kw = jax.random.split(jax.random.PRNGKey(0))
    B2 = 32
    x2 = jax.random.normal(kx, (B2, A, HIDDEN), dtype=jnp.float32)
    w2 = jax.random.normal(kw, (HIDDEN,), dtype=jnp.float32)
    out2 = jax.block_until_ready(equivariant_layer_norm(x2, w2, eps=1e-5, block_b=8))
    ref2 = _reference(x2, w2, eps=1e-5)
    assert jnp.allclose(out2, ref2, atol=1e-5, rtol=1e-5), "mismatch vs reference (multi-block)"

    print("KERNEL_OK")
</pallas_src>

<mosaic_0001>
module attributes {stable_mosaic.version = 11 : i64} {
  func.func @_eq_layernorm_kernel(%arg0: i32, %arg1: memref<2x128xf32, #tpu.memory_space<vmem>>, %arg2: memref<1x128xf32, #tpu.memory_space<vmem>>, %arg3: memref<128x128xf32, #tpu.memory_space<vmem>>, %arg4: memref<2x128xf32, #tpu.memory_space<vmem>>) attributes {dimension_semantics = [#tpu.dimension_semantics<parallel>], iteration_bounds = array<i64: 1>, scalar_prefetch = 0 : i64, scratch_operands = 0 : i64, tpu.core_type = #tpu.core_type<tc>, window_params = [{transform_indices = @transform_0, window_bounds = array<i64: 2, 128>}, {pipeline_mode = #tpu.pipeline_mode<synchronous>, transform_indices = @transform_1, window_bounds = array<i64: 1, 128>}, {pipeline_mode = #tpu.pipeline_mode<synchronous>, transform_indices = @transform_2, window_bounds = array<i64: 128, 128>}, {transform_indices = @transform_3, window_bounds = array<i64: 2, 128>}]} {
    %c0 = arith.constant 0 : index
    %c0_0 = arith.constant 0 : index
    %0 = vector.load %arg1[%c0, %c0_0] : memref<2x128xf32, #tpu.memory_space<vmem>>, vector<2x128xf32>
    %c0_1 = arith.constant 0 : index
    %c0_2 = arith.constant 0 : index
    %1 = vector.load %arg2[%c0_1, %c0_2] : memref<1x128xf32, #tpu.memory_space<vmem>>, vector<1x128xf32>
    %c0_3 = arith.constant 0 : index
    %c0_4 = arith.constant 0 : index
    %2 = vector.load %arg3[%c0_3, %c0_4] : memref<128x128xf32, #tpu.memory_space<vmem>>, vector<128x128xf32>
    %cst = arith.constant dense<0.000000e+00> : vector<2x128xf32>
    %3 = tpu.matmul %0, %2, %cst {dimension_numbers = #tpu.dot_dimension_numbers<[1], [0], [0], [1], [0, 0, 1, 1], [], []>, precision = #tpu.contract_precision<fp32>} : vector<2x128xf32>, vector<128x128xf32>, vector<2x128xf32> -> vector<2x128xf32>
    %4 = arith.subf %0, %3 : vector<2x128xf32>
    %5 = arith.mulf %4, %4 : vector<2x128xf32>
    %cst_5 = arith.constant 1.000000e+00 : f32
    %6 = vector.broadcast %cst_5 : f32 to vector<128x128xf32>
    %cst_6 = arith.constant dense<0.000000e+00> : vector<2x128xf32>
    %7 = tpu.matmul %5, %6, %cst_6 {dimension_numbers = #tpu.dot_dimension_numbers<[1], [0], [0], [1], [0, 0, 1, 1], [], []>, precision = #tpu.contract_precision<fp32>} : vector<2x128xf32>, vector<128x128xf32>, vector<2x128xf32> -> vector<2x128xf32>
    %cst_7 = arith.constant 3.125000e-02 : f32
    %8 = vector.broadcast %cst_7 : f32 to vector<2x128xf32>
    %9 = arith.mulf %7, %8 : vector<2x128xf32>
    %cst_8 = arith.constant 9.99999974E-6 : f32
    %10 = vector.broadcast %cst_8 : f32 to vector<2x128xf32>
    %11 = arith.addf %9, %10 : vector<2x128xf32>
    %12 = math.rsqrt %11 : vector<2x128xf32>
    %13 = vector.broadcast %1 : vector<1x128xf32> to vector<2x128xf32>
    %14 = arith.mulf %12, %13 : vector<2x128xf32>
    %15 = arith.mulf %4, %14 : vector<2x128xf32>
    %c0_9 = arith.constant 0 : index
    %c0_10 = arith.constant 0 : index
    %16 = vector.load %arg4[%c0_9, %c0_10] : memref<2x128xf32, #tpu.memory_space<vmem>>, vector<2x128xf32>
    tpu.vector_store %arg4[%c0_9, %c0_10], %15 {strides = array<i32>} : memref<2x128xf32, #tpu.memory_space<vmem>>, vector<2x128xf32>,
    return
  }
  func.func @transform_0(%arg0: i32) -> (i32, i32) {
    %c0_i32 = arith.constant 0 : i32
    %c0_i32_0 = arith.constant 0 : i32
    return %arg0, %c0_i32 : i32, i32
  }
  func.func @transform_1(%arg0: i32) -> (i32, i32) {
    %c0_i32 = arith.constant 0 : i32
    %c0_i32_0 = arith.constant 0 : i32
    %c0_i32_1 = arith.constant 0 : i32
    return %c0_i32, %c0_i32_0 : i32, i32
  }
  func.func @transform_2(%arg0: i32) -> (i32, i32) {
    %c0_i32 = arith.constant 0 : i32
    %c0_i32_0 = arith.constant 0 : i32
    %c0_i32_1 = arith.constant 0 : i32
    return %c0_i32, %c0_i32_0 : i32, i32
  }
  func.func @transform_3(%arg0: i32) -> (i32, i32) {
    %c0_i32 = arith.constant 0 : i32
    %c0_i32_0 = arith.constant 0 : i32
    return %arg0, %c0_i32 : i32, i32
  }
}

</mosaic_0001>

<llo_original>
// kernel: tpu_custom_call.1
$region0: #{tpu_custom_call.1}
  #allocation0 [shape = 'u32[]', space=smem, size = 0x4, offset = 0x4, fixed_abs, tag = 'smem constant byte address 0x4 - core index']
  #allocation1 [shape = 'u32[144,128]{1,0:T(1,128)}', space=vmem, size = 0x12000, scoped, tag = 'internal scratch']
  %s0 = inlined_call_operand.hbm [shape: f32[2,128], index: 0, kind: input, shape index: {}]
  %s1 = inlined_call_operand.vmem [shape: f32[1,128], index: 1, kind: input, shape index: {}]
  %s2 = inlined_call_operand.hbm [shape: f32[128,128], index: 2, kind: input, shape index: {}]
  %s3 = inlined_call_operand.hbm [shape: f32[2,128], index: 3, kind: output, shape index: {}]
  %s4 = sld [smem:[#allocation0]]
  $region30: #{tpu_custom_call.1} parent=0
    _
  %s6 = ssub.s32 1, %s4
  %s7 = scalar_select 0, %s6, %s4
  $region1: #{tpu_custom_call.1} parent=0
    #allocation2 [shape = 'u8[1024]{0}', space=vmem, size = 0x400, scoped, tag = 'input window, operand 0, single buffered']
    #allocation3 [shape = 's32[1]{0}', space=sflag, size = 0x4, scoped, tag = 'scoped memory for tpu_custom_call.1']
    #allocation4 [shape = 's32[1]{0}', space=sflag, size = 0x4, scoped, tag = 'scoped memory for tpu_custom_call.1']
    #allocation5 [shape = 'u8[65536]{0}', space=vmem, size = 0x10000, scoped, tag = 'input window, operand 2, single buffered']
    #allocation6 [shape = 's32[1]{0}', space=sflag, size = 0x4, scoped, tag = 'scoped memory for tpu_custom_call.1']
    #allocation7 [shape = 'u8[1024]{0}', space=vmem, size = 0x400, scoped, tag = 'output window, operand 0, single buffered']
    %8 = vsyncpa [#allocation3], 0
    %9 = vsyncpa [#allocation6], 0
    %10 = vsyncpa [#allocation4], 0
    // Predicated region
    $region2: #{tpu_custom_call.1} parent=1 // pred_check
      _
    $region3: #{tpu_custom_call.1} parent=1 // pred_check_branch
      %12 = sbr.rel (0) target = $region5
    $region4: #{tpu_custom_call.1} parent=1 // pred_region
      %s14 = ssub.s32 32, 32
      %15 = vsyncadd [#allocation3], %s14
      %s17 = sshll.u32 [#allocation2], 4
      %s18 = int_to_ptr.vmem [resolvable:$true] %s17
      %20 = dma.hbm_to_vmem [thread:$0]  %s0, 32, %s18, [#allocation3]
    $region5: #{tpu_custom_call.1} parent=1 // pred_fallthru
      _
    // Predicated region
    $region6: #{tpu_custom_call.1} parent=1 // pred_check
      _
    $region7: #{tpu_custom_call.1} parent=1 // pred_check_branch
      %22 = sbr.rel (0) target = $region9
    $region8: #{tpu_custom_call.1} parent=1 // pred_region
      _
    $region9: #{tpu_custom_call.1} parent=1 // pred_fallthru
      _
    // Predicated region
    $region10: #{tpu_custom_call.1} parent=1 // pred_check
      _
    $region11: #{tpu_custom_call.1} parent=1 // pred_check_branch
      %24 = sbr.rel (0) target = $region13
    $region12: #{tpu_custom_call.1} parent=1 // pred_region
      %s26 = ssub.s32 2048, 2048
      %27 = vsyncadd [#allocation6], %s26
      %s28 = sshll.u32 [#allocation5], 4
      %s29 = int_to_ptr.vmem [resolvable:$true] %s28
      %34 = dma.hbm_to_vmem [thread:$0]  %s2, 2048, %s29, [#allocation6], 128, 128, 8
    $region13: #{tpu_custom_call.1} parent=1 // pred_fallthru
      _
    // Predicated region
    $region14: #{tpu_custom_call.1} parent=1 // pred_check
      _
    $region15: #{tpu_custom_call.1} parent=1 // pred_check_branch
      %36 = sbr.rel (0) target = $region17
    $region16: #{tpu_custom_call.1} parent=1 // pred_region
      %37 = dma.done [#allocation3], 32
    $region17: #{tpu_custom_call.1} parent=1 // pred_fallthru
      _
    // Predicated region
    $region18: #{tpu_custom_call.1} parent=1 // pred_check
      _
    $region19: #{tpu_custom_call.1} parent=1 // pred_check_branch
      %39 = sbr.rel (0) target = $region21
    $region20: #{tpu_custom_call.1} parent=1 // pred_region
      %40 = dma.done [#allocation6], 2048
    $region21: #{tpu_custom_call.1} parent=1 // pred_fallthru
      _
    %v41 = vld [vmem:[#allocation2] sm:$0x3]
    %v42 = vld [vmem:[%s1] sm:$0x1]
    %v43 = vld [vmem:[#allocation5] sm:$0xff]
    %v44 = vld [vmem:[#allocation5 + $0x8] sm:$0xff]
    %v45 = vld [vmem:[#allocation5 + $0x10] sm:$0xff]
    %v46 = vld [vmem:[#allocation5 + $0x18] sm:$0xff]
    %v47 = vld [vmem:[#allocation5 + $0x20] sm:$0xff]
    %v48 = vld [vmem:[#allocation5 + $0x28] sm:$0xff]
    %v49 = vld [vmem:[#allocation5 + $0x30] sm:$0xff]
    %v50 = vld [vmem:[#allocation5 + $0x38] sm:$0xff]
    %v51 = vld [vmem:[#allocation5 + $0x40] sm:$0xff]
    %v52 = vld [vmem:[#allocation5 + $0x48] sm:$0xff]
    %v53 = vld [vmem:[#allocation5 + $0x50] sm:$0xff]
    %v54 = vld [vmem:[#allocation5 + $0x58] sm:$0xff]
    %v55 = vld [vmem:[#allocation5 + $0x60] sm:$0xff]
    %v56 = vld [vmem:[#allocation5 + $0x68] sm:$0xff]
    %v57 = vld [vmem:[#allocation5 + $0x70] sm:$0xff]
    %v58 = vld [vmem:[#allocation5 + $0x78] sm:$0xff]
    %59 = vmatprep.subr.mxu0 0.0
    %v60 = vand.u32 %v58, 4294901760
    %61 = vmatpush1.msra.mxu0 %v60
    %62 = vmatprep.subr.mxu0 0.0
    %v63 = vand.u32 %v57, 4294901760
    %64 = vmatpush1.msra.mxu0 %v63
    %65 = vmatprep.subr.mxu0 0.0
    %v66 = vand.u32 %v56, 4294901760
    %67 = vmatpush1.msra.mxu0 %v66
    %68 = vmatprep.subr.mxu0 0.0
    %v69 = vand.u32 %v55, 4294901760
    %70 = vmatpush1.msra.mxu0 %v69
    %71 = vmatprep.subr.mxu0 0.0
    %v72 = vand.u32 %v54, 4294901760
    %73 = vmatpush1.msra.mxu0 %v72
    %74 = vmatprep.subr.mxu0 0.0
    %v75 = vand.u32 %v53, 4294901760
    %76 = vmatpush1.msra.mxu0 %v75
    %77 = vmatprep.subr.mxu0 0.0
    %v78 = vand.u32 %v52, 4294901760
    %79 = vmatpush1.msra.mxu0 %v78
    %80 = vmatprep.subr.mxu0 0.0
    %v81 = vand.u32 %v51, 4294901760
    %82 = vmatpush1.msra.mxu0 %v81
    %83 = vmatprep.subr.mxu0 0.0
    %v84 = vand.u32 %v50, 4294901760
    %85 = vmatpush1.msra.mxu0 %v84
    %86 = vmatprep.subr.mxu0 0.0
    %v87 = vand.u32 %v49, 4294901760
    %88 = vmatpush1.msra.mxu0 %v87
    %89 = vmatprep.subr.mxu0 0.0
    %v90 = vand.u32 %v48, 4294901760
    %91 = vmatpush1.msra.mxu0 %v90
    %92 = vmatprep.subr.mxu0 0.0
    %v93 = vand.u32 %v47, 4294901760
    %94 = vmatpush1.msra.mxu0 %v93
    %95 = vmatprep.subr.mxu0 0.0
    %v96 = vand.u32 %v46, 4294901760
    %97 = vmatpush1.msra.mxu0 %v96
    %98 = vmatprep.subr.mxu0 0.0
    %v99 = vand.u32 %v45, 4294901760
    %100 = vmatpush1.msra.mxu0 %v99
    %101 = vmatprep.subr.mxu0 0.0
    %v102 = vand.u32 %v44, 4294901760
    %103 = vmatpush1.msra.mxu0 %v102
    %104 = vmatprep.subr.mxu0 0.0
    %v105 = vand.u32 %v43, 4294901760
    %106 = vmatpush1.msra.mxu0 %v105
    %107 = vmatprep.subr.mxu0 0.0
    %108 = vmatpush2.msra.mxu0 0.0
    %109 = vmatprep.subr.mxu0 0.0
    %110 = vmatpush2.msra.mxu0 0.0
    %111 = vmatprep.subr.mxu0 0.0
    %112 = vmatpush2.msra.mxu0 0.0
    %113 = vmatprep.subr.mxu0 0.0
    %114 = vmatpush2.msra.mxu0 0.0
    %115 = vmatprep.subr.mxu0 0.0
    %116 = vmatpush2.msra.mxu0 0.0
    %117 = vmatprep.subr.mxu0 0.0
    %118 = vmatpush2.msra.mxu0 0.0
    %119 = vmatprep.subr.mxu0 0.0
    %120 = vmatpush2.msra.mxu0 0.0
    %121 = vmatprep.subr.mxu0 0.0
    %122 = vmatpush2.msra.mxu0 0.0
    %123 = vmatprep.subr.mxu0 0.0
    %124 = vmatpush2.msra.mxu0 0.0
    %125 = vmatprep.subr.mxu0 0.0
    %126 = vmatpush2.msra.mxu0 0.0
    %127 = vmatprep.subr.mxu0 0.0
    %128 = vmatpush2.msra.mxu0 0.0
    %129 = vmatprep.subr.mxu0 0.0
    %130 = vmatpush2.msra.mxu0 0.0
    %131 = vmatprep.subr.mxu0 0.0
    %132 = vmatpush2.msra.mxu0 0.0
    %133 = vmatprep.subr.mxu0 0.0
    %134 = vmatpush2.msra.mxu0 0.0
    %135 = vmatprep.subr.mxu0 0.0
    %136 = vmatpush2.msra.mxu0 0.0
    %137 = vmatprep.subr.mxu0 0.0
    %138 = vmatpush2.msra.mxu0 0.0
    %139 = vmatprep.mubr.f32.mxu0 0.0
    %v140 = vand.u32 %v41, 4294901760
    %v141 = vsub.f32 %v41, %v140
    %v142 = vand.u32 %v141, 4294901760
    %v143 = vsub.f32 %v141, %v142
    %v144 = vand.u32 %v143, 4294901760
    %145 = vmatmul.mubr.f32.gmra.mxu0 %v144
    %v146 = vpop.f32.mrf.mxu0
    %v147 = vadd.f32 0.0, %v146
    %v148 = vpop.f32.mrf.mxu0
    %149 = vdwg.mxu0
    %150 = vmatprep.subr.mxu0 0.0
    %v151 = vand.u32 %v58, 4294901760
    %v152 = vsub.f32 %v58, %v151
    %v153 = vand.u32 %v152, 4294901760
    %v154 = vsub.f32 %v152, %v153
    %v155 = vand.u32 %v154, 4294901760
    %156 = vmatpush1.msra.mxu0 %v155
    %157 = vmatprep.subr.mxu0 0.0
    %v158 = vand.u32 %v57, 4294901760
    %v159 = vsub.f32 %v57, %v158
    %v160 = vand.u32 %v159, 4294901760
    %v161 = vsub.f32 %v159, %v160
    %v162 = vand.u32 %v161, 4294901760
    %163 = vmatpush1.msra.mxu0 %v162
    %164 = vmatprep.subr.mxu0 0.0
    %v165 = vand.u32 %v56, 4294901760
    %v166 = vsub.f32 %v56, %v165
    %v167 = vand.u32 %v166, 4294901760
    %v168 = vsub.f32 %v166, %v167
    %v169 = vand.u32 %v168, 4294901760
    %170 = vmatpush1.msra.mxu0 %v169
    %171 = vmatprep.subr.mxu0 0.0
    %v172 = vand.u32 %v55, 4294901760
    %v173 = vsub.f32 %v55, %v172
    %v174 = vand.u32 %v173, 4294901760
    %v175 = vsub.f32 %v173, %v174
    %v176 = vand.u32 %v175, 4294901760
    %177 = vmatpush1.msra.mxu0 %v176
    %178 = vmatprep.subr.mxu0 0.0
    %v179 = vand.u32 %v54, 4294901760
    %v180 = vsub.f32 %v54, %v179
    %v181 = vand.u32 %v180, 4294901760
    %v182 = vsub.f32 %v180, %v181
    %v183 = vand.u32 %v182, 4294901760
    %184 = vmatpush1.msra.mxu0 %v183
    %185 = vmatprep.subr.mxu0 0.0
    %v186 = vand.u32 %v53, 4294901760
    %v187 = vsub.f32 %v53, %v186
    %v188 = vand.u32 %v187, 4294901760
    %v189 = vsub.f32 %v187, %v188
    %v190 = vand.u32 %v189, 4294901760
    %191 = vmatpush1.msra.mxu0 %v190
    %192 = vmatprep.subr.mxu0 0.0
    %v193 = vand.u32 %v52, 4294901760
    %v194 = vsub.f32 %v52, %v193
    %v195 = vand.u32 %v194, 4294901760
    %v196 = vsub.f32 %v194, %v195
    %v197 = vand.u32 %v196, 4294901760
    %198 = vmatpush1.msra.mxu0 %v197
    %199 = vmatprep.subr.mxu0 0.0
    %v200 = vand.u32 %v51, 4294901760
    %v201 = vsub.f32 %v51, %v200
    %v202 = vand.u32 %v201, 4294901760
    %v203 = vsub.f32 %v201, %v202
    %v204 = vand.u32 %v203, 4294901760
    %205 = vmatpush1.msra.mxu0 %v204
    %206 = vmatprep.subr.mxu0 0.0
    %v207 = vand.u32 %v50, 4294901760
    %v208 = vsub.f32 %v50, %v207
    %v209 = vand.u32 %v208, 4294901760
    %v210 = vsub.f32 %v208, %v209
    %v211 = vand.u32 %v210, 4294901760
    %212 = vmatpush1.msra.mxu0 %v211
    %213 = vmatprep.subr.mxu0 0.0
    %v214 = vand.u32 %v49, 4294901760
    %v215 = vsub.f32 %v49, %v214
    %v216 = vand.u32 %v215, 4294901760
    %v217 = vsub.f32 %v215, %v216
    %v218 = vand.u32 %v217, 4294901760
    %219 = vmatpush1.msra.mxu0 %v218
    %220 = vmatprep.subr.mxu0 0.0
    %v221 = vand.u32 %v48, 4294901760
    %v222 = vsub.f32 %v48, %v221
    %v223 = vand.u32 %v222, 4294901760
    %v224 = vsub.f32 %v222, %v223
    %v225 = vand.u32 %v224, 4294901760
    %226 = vmatpush1.msra.mxu0 %v225
    %227 = vmatprep.subr.mxu0 0.0
    %v228 = vand.u32 %v47, 4294901760
    %v229 = vsub.f32 %v47, %v228
    %v230 = vand.u32 %v229, 4294901760
    %v231 = vsub.f32 %v229, %v230
    %v232 = vand.u32 %v231, 4294901760
    %233 = vmatpush1.msra.mxu0 %v232
    %234 = vmatprep.subr.mxu0 0.0
    %v235 = vand.u32 %v46, 4294901760
    %v236 = vsub.f32 %v46, %v235
    %v237 = vand.u32 %v236, 4294901760
    %v238 = vsub.f32 %v236, %v237
    %v239 = vand.u32 %v238, 4294901760
    %240 = vmatpush1.msra.mxu0 %v239
    %241 = vmatprep.subr.mxu0 0.0
    %v242 = vand.u32 %v45, 4294901760
    %v243 = vsub.f32 %v45, %v242
    %v244 = vand.u32 %v243, 4294901760
    %v245 = vsub.f32 %v243, %v244
    %v246 = vand.u32 %v245, 4294901760
    %247 = vmatpush1.msra.mxu0 %v246
    %248 = vmatprep.subr.mxu0 0.0
    %v249 = vand.u32 %v44, 4294901760
    %v250 = vsub.f32 %v44, %v249
    %v251 = vand.u32 %v250, 4294901760
    %v252 = vsub.f32 %v250, %v251
    %v253 = vand.u32 %v252, 4294901760
    %254 = vmatpush1.msra.mxu0 %v253
    %255 = vmatprep.subr.mxu0 0.0
    %v256 = vand.u32 %v43, 4294901760
    %v257 = vsub.f32 %v43, %v256
    %v258 = vand.u32 %v257, 4294901760
    %v259 = vsub.f32 %v257, %v258
    %v260 = vand.u32 %v259, 4294901760
    %261 = vmatpush1.msra.mxu0 %v260
    %262 = vmatprep.subr.mxu0 0.0
    %263 = vmatpush2.msra.mxu0 0.0
    %264 = vmatprep.subr.mxu0 0.0
    %265 = vmatpush2.msra.mxu0 0.0
    %266 = vmatprep.subr.mxu0 0.0
    %267 = vmatpush2.msra.mxu0 0.0
    %268 = vmatprep.subr.mxu0 0.0
    %269 = vmatpush2.msra.mxu0 0.0
    %270 = vmatprep.subr.mxu0 0.0
    %271 = vmatpush2.msra.mxu0 0.0
    %272 = vmatprep.subr.mxu0 0.0
    %273 = vmatpush2.msra.mxu0 0.0
    %274 = vmatprep.subr.mxu0 0.0
    %275 = vmatpush2.msra.mxu0 0.0
    %276 = vmatprep.subr.mxu0 0.0
    %277 = vmatpush2.msra.mxu0 0.0
    %278 = vmatprep.subr.mxu0 0.0
    %279 = vmatpush2.msra.mxu0 0.0
    %280 = vmatprep.subr.mxu0 0.0
    %281 = vmatpush2.msra.mxu0 0.0
    %282 = vmatprep.subr.mxu0 0.0
    %283 = vmatpush2.msra.mxu0 0.0
    %284 = vmatprep.subr.mxu0 0.0
    %285 = vmatpush2.msra.mxu0 0.0
    %286 = vmatprep.subr.mxu0 0.0
    %287 = vmatpush2.msra.mxu0 0.0
    %288 = vmatprep.subr.mxu0 0.0
    %289 = vmatpush2.msra.mxu0 0.0
    %290 = vmatprep.subr.mxu0 0.0
    %291 = vmatpush2.msra.mxu0 0.0
    %292 = vmatprep.subr.mxu0 0.0
    %293 = vmatpush2.msra.mxu0 0.0
    %294 = vmatprep.mubr.f32.mxu0 0.0
    %v295 = vand.u32 %v41, 4294901760
    %296 = vmatmul.mubr.f32.gmra.mxu0 %v295
    %v297 = vpop.f32.mrf.mxu0
    %v298 = vadd.f32 %v147, %v297
    %v299 = vpop.f32.mrf.mxu0
    %300 = vdwg.mxu0
    %301 = vmatprep.subr.mxu0 0.0
    %v302 = vand.u32 %v58, 4294901760
    %v303 = vsub.f32 %v58, %v302
    %304 = vmatpush1.msra.mxu0 %v303
    %305 = vmatprep.subr.mxu0 0.0
    %v306 = vand.u32 %v57, 4294901760
    %v307 = vsub.f32 %v57, %v306
    %308 = vmatpush1.msra.mxu0 %v307
    %309 = vmatprep.subr.mxu0 0.0
    %v310 = vand.u32 %v56, 4294901760
    %v311 = vsub.f32 %v56, %v310
    %312 = vmatpush1.msra.mxu0 %v311
    %313 = vmatprep.subr.mxu0 0.0
    %v314 = vand.u32 %v55, 4294901760
    %v315 = vsub.f32 %v55, %v314
    %316 = vmatpush1.msra.mxu0 %v315
    %317 = vmatprep.subr.mxu0 0.0
    %v318 = vand.u32 %v54, 4294901760
    %v319 = vsub.f32 %v54, %v318
    %320 = vmatpush1.msra.mxu0 %v319
    %321 = vmatprep.subr.mxu0 0.0
    %v322 = vand.u32 %v53, 4294901760
    %v323 = vsub.f32 %v53, %v322
    %324 = vmatpush1.msra.mxu0 %v323
    %325 = vmatprep.subr.mxu0 0.0
    %v326 = vand.u32 %v52, 4294901760
    %v327 = vsub.f32 %v52, %v326
    %328 = vmatpush1.msra.mxu0 %v327
    %329 = vmatprep.subr.mxu0 0.0
    %v330 = vand.u32 %v51, 4294901760
    %v331 = vsub.f32 %v51, %v330
    %332 = vmatpush1.msra.mxu0 %v331
    %333 = vmatprep.subr.mxu0 0.0
    %v334 = vand.u32 %v50, 4294901760
    %v335 = vsub.f32 %v50, %v334
    %336 = vmatpush1.msra.mxu0 %v335
    %337 = vmatprep.subr.mxu0 0.0
    %v338 = vand.u32 %v49, 4294901760
    %v339 = vsub.f32 %v49, %v338
    %340 = vmatpush1.msra.mxu0 %v339
    %341 = vmatprep.subr.mxu0 0.0
    %v342 = vand.u32 %v48, 4294901760
    %v343 = vsub.f32 %v48, %v342
    %344 = vmatpush1.msra.mxu0 %v343
    %345 = vmatprep.subr.mxu0 0.0
    %v346 = vand.u32 %v47, 4294901760
    %v347 = vsub.f32 %v47, %v346
    %348 = vmatpush1.msra.mxu0 %v347
    %349 = vmatprep.subr.mxu0 0.0
    %v350 = vand.u32 %v46, 4294901760
    %v351 = vsub.f32 %v46, %v350
    %352 = vmatpush1.msra.mxu0 %v351
    %353 = vmatprep.subr.mxu0 0.0
    %v354 = vand.u32 %v45, 4294901760
    %v355 = vsub.f32 %v45, %v354
    %356 = vmatpush1.msra.mxu0 %v355
    %357 = vmatprep.subr.mxu0 0.0
    %v358 = vand.u32 %v44, 4294901760
    %v359 = vsub.f32 %v44, %v358
    %360 = vmatpush1.msra.mxu0 %v359
    %361 = vmatprep.subr.mxu0 0.0
    %v362 = vand.u32 %v43, 4294901760
    %v363 = vsub.f32 %v43, %v362
    %364 = vmatpush1.msra.mxu0 %v363
    %365 = vmatprep.subr.mxu0 0.0
    %366 = vmatpush2.msra.mxu0 0.0
    %367 = vmatprep.subr.mxu0 0.0
    %368 = vmatpush2.msra.mxu0 0.0
    %369 = vmatprep.subr.mxu0 0.0
    %370 = vmatpush2.msra.mxu0 0.0
    %371 = vmatprep.subr.mxu0 0.0
    %372 = vmatpush2.msra.mxu0 0.0
    %373 = vmatprep.subr.mxu0 0.0
    %374 = vmatpush2.msra.mxu0 0.0
    %375 = vmatprep.subr.mxu0 0.0
    %376 = vmatpush2.msra.mxu0 0.0
    %377 = vmatprep.subr.mxu0 0.0
    %378 = vmatpush2.msra.mxu0 0.0
    %379 = vmatprep.subr.mxu0 0.0
    %380 = vmatpush2.msra.mxu0 0.0
    %381 = vmatprep.subr.mxu0 0.0
    %382 = vmatpush2.msra.mxu0 0.0
    %383 = vmatprep.subr.mxu0 0.0
    %384 = vmatpush2.msra.mxu0 0.0
    %385 = vmatprep.subr.mxu0 0.0
    %386 = vmatpush2.msra.mxu0 0.0
    %387 = vmatprep.subr.mxu0 0.0
    %388 = vmatpush2.msra.mxu0 0.0
    %389 = vmatprep.subr.mxu0 0.0
    %390 = vmatpush2.msra.mxu0 0.0
    %391 = vmatprep.subr.mxu0 0.0
    %392 = vmatpush2.msra.mxu0 0.0
    %393 = vmatprep.subr.mxu0 0.0
    %394 = vmatpush2.msra.mxu0 0.0
    %395 = vmatprep.subr.mxu0 0.0
    %396 = vmatpush2.msra.mxu0 0.0
    %397 = vmatprep.mubr.f32.mxu0 0.0
    %v398 = vand.u32 %v41, 4294901760
    %v399 = vsub.f32 %v41, %v398
    %400 = vmatmul.mubr.f32.gmra.mxu0 %v399
    %v401 = vpop.f32.mrf.mxu0
    %v402 = vadd.f32 %v298, %v401
    %v403 = vpop.f32.mrf.mxu0
    %404 = vdwg.mxu0
    %405 = vmatprep.subr.mxu0 0.0
    %v406 = vand.u32 %v58, 4294901760
    %407 = vmatpush1.msra.mxu0 %v406
    %408 = vmatprep.subr.mxu0 0.0
    %v409 = vand.u32 %v57, 4294901760
    %410 = vmatpush1.msra.mxu0 %v409
    %411 = vmatprep.subr.mxu0 0.0
    %v412 = vand.u32 %v56, 4294901760
    %413 = vmatpush1.msra.mxu0 %v412
    %414 = vmatprep.subr.mxu0 0.0
    %v415 = vand.u32 %v55, 4294901760
    %416 = vmatpush1.msra.mxu0 %v415
    %417 = vmatprep.subr.mxu0 0.0
    %v418 = vand.u32 %v54, 4294901760
    %419 = vmatpush1.msra.mxu0 %v418
    %420 = vmatprep.subr.mxu0 0.0
    %v421 = vand.u32 %v53, 4294901760
    %422 = vmatpush1.msra.mxu0 %v421
    %423 = vmatprep.subr.mxu0 0.0
    %v424 = vand.u32 %v52, 4294901760
    %425 = vmatpush1.msra.mxu0 %v424
    %426 = vmatprep.subr.mxu0 0.0
    %v427 = vand.u32 %v51, 4294901760
    %428 = vmatpush1.msra.mxu0 %v427
    %429 = vmatprep.subr.mxu0 0.0
    %v430 = vand.u32 %v50, 4294901760
    %431 = vmatpush1.msra.mxu0 %v430
    %432 = vmatprep.subr.mxu0 0.0
    %v433 = vand.u32 %v49, 4294901760
    %434 = vmatpush1.msra.mxu0 %v433
    %435 = vmatprep.subr.mxu0 0.0
    %v436 = vand.u32 %v48, 4294901760
    %437 = vmatpush1.msra.mxu0 %v436
    %438 = vmatprep.subr.mxu0 0.0
    %v439 = vand.u32 %v47, 4294901760
    %440 = vmatpush1.msra.mxu0 %v439
    %441 = vmatprep.subr.mxu0 0.0
    %v442 = vand.u32 %v46, 4294901760
    %443 = vmatpush1.msra.mxu0 %v442
    %444 = vmatprep.subr.mxu0 0.0
    %v445 = vand.u32 %v45, 4294901760
    %446 = vmatpush1.msra.mxu0 %v445
    %447 = vmatprep.subr.mxu0 0.0
    %v448 = vand.u32 %v44, 4294901760
    %449 = vmatpush1.msra.mxu0 %v448
    %450 = vmatprep.subr.mxu0 0.0
    %v451 = vand.u32 %v43, 4294901760
    %452 = vmatpush1.msra.mxu0 %v451
    %453 = vmatprep.subr.mxu0 0.0
    %454 = vmatpush2.msra.mxu0 0.0
    %455 = vmatprep.subr.mxu0 0.0
    %456 = vmatpush2.msra.mxu0 0.0
    %457 = vmatprep.subr.mxu0 0.0
    %458 = vmatpush2.msra.mxu0 0.0
    %459 = vmatprep.subr.mxu0 0.0
    %460 = vmatpush2.msra.mxu0 0.0
    %461 = vmatprep.subr.mxu0 0.0
    %462 = vmatpush2.msra.mxu0 0.0
    %463 = vmatprep.subr.mxu0 0.0
    %464 = vmatpush2.msra.mxu0 0.0
    %465 = vmatprep.subr.mxu0 0.0
    %466 = vmatpush2.msra.mxu0 0.0
    %467 = vmatprep.subr.mxu0 0.0
    %468 = vmatpush2.msra.mxu0 0.0
    %469 = vmatprep.subr.mxu0 0.0
    %470 = vmatpush2.msra.mxu0 0.0
    %471 = vmatprep.subr.mxu0 0.0
    %472 = vmatpush2.msra.mxu0 0.0
    %473 = vmatprep.subr.mxu0 0.0
    %474 = vmatpush2.msra.mxu0 0.0
    %475 = vmatprep.subr.mxu0 0.0
    %476 = vmatpush2.msra.mxu0 0.0
    %477 = vmatprep.subr.mxu0 0.0
    %478 = vmatpush2.msra.mxu0 0.0
    %479 = vmatprep.subr.mxu0 0.0
    %480 = vmatpush2.msra.mxu0 0.0
    %481 = vmatprep.subr.mxu0 0.0
    %482 = vmatpush2.msra.mxu0 0.0
    %483 = vmatprep.subr.mxu0 0.0
    %484 = vmatpush2.msra.mxu0 0.0
    %485 = vmatprep.mubr.f32.mxu0 0.0
    %v486 = vand.u32 %v41, 4294901760
    %v487 = vsub.f32 %v41, %v486
    %v488 = vand.u32 %v487, 4294901760
    %489 = vmatmul.mubr.f32.gmra.mxu0 %v488
    %v490 = vpop.f32.mrf.mxu0
    %v491 = vadd.f32 %v402, %v490
    %v492 = vpop.f32.mrf.mxu0
    %493 = vdwg.mxu0
    %494 = vmatprep.subr.mxu0 0.0
    %v495 = vand.u32 %v58, 4294901760
    %v496 = vsub.f32 %v58, %v495
    %v497 = vand.u32 %v496, 4294901760
    %498 = vmatpush1.msra.mxu0 %v497
    %499 = vmatprep.subr.mxu0 0.0
    %v500 = vand.u32 %v57, 4294901760
    %v501 = vsub.f32 %v57, %v500
    %v502 = vand.u32 %v501, 4294901760
    %503 = vmatpush1.msra.mxu0 %v502
    %504 = vmatprep.subr.mxu0 0.0
    %v505 = vand.u32 %v56, 4294901760
    %v506 = vsub.f32 %v56, %v505
    %v507 = vand.u32 %v506, 4294901760
    %508 = vmatpush1.msra.mxu0 %v507
    %509 = vmatprep.subr.mxu0 0.0
    %v510 = vand.u32 %v55, 4294901760
    %v511 = vsub.f32 %v55, %v510
    %v512 = vand.u32 %v511, 4294901760
    %513 = vmatpush1.msra.mxu0 %v512
    %514 = vmatprep.subr.mxu0 0.0
    %v515 = vand.u32 %v54, 4294901760
    %v516 = vsub.f32 %v54, %v515
    %v517 = vand.u32 %v516, 4294901760
    %518 = vmatpush1.msra.mxu0 %v517
    %519 = vmatprep.subr.mxu0 0.0
    %v520 = vand.u32 %v53, 4294901760
    %v521 = vsub.f32 %v53, %v520
    %v522 = vand.u32 %v521, 4294901760
    %523 = vmatpush1.msra.mxu0 %v522
    %524 = vmatprep.subr.mxu0 0.0
    %v525 = vand.u32 %v52, 4294901760
    %v526 = vsub.f32 %v52, %v525
    %v527 = vand.u32 %v526, 4294901760
    %528 = vmatpush1.msra.mxu0 %v527
    %529 = vmatprep.subr.mxu0 0.0
    %v530 = vand.u32 %v51, 4294901760
    %v531 = vsub.f32 %v51, %v530
    %v532 = vand.u32 %v531, 4294901760
    %533 = vmatpush1.msra.mxu0 %v532
    %534 = vmatprep.subr.mxu0 0.0
    %v535 = vand.u32 %v50, 4294901760
    %v536 = vsub.f32 %v50, %v535
    %v537 = vand.u32 %v536, 4294901760
    %538 = vmatpush1.msra.mxu0 %v537
    %539 = vmatprep.subr.mxu0 0.0
    %v540 = vand.u32 %v49, 4294901760
    %v541 = vsub.f32 %v49, %v540
    %v542 = vand.u32 %v541, 4294901760
    %543 = vmatpush1.msra.mxu0 %v542
    %544 = vmatprep.subr.mxu0 0.0
    %v545 = vand.u32 %v48, 4294901760
    %v546 = vsub.f32 %v48, %v545
    %v547 = vand.u32 %v546, 4294901760
    %548 = vmatpush1.msra.mxu0 %v547
    %549 = vmatprep.subr.mxu0 0.0
    %v550 = vand.u32 %v47, 4294901760
    %v551 = vsub.f32 %v47, %v550
    %v552 = vand.u32 %v551, 4294901760
    %553 = vmatpush1.msra.mxu0 %v552
    %554 = vmatprep.subr.mxu0 0.0
    %v555 = vand.u32 %v46, 4294901760
    %v556 = vsub.f32 %v46, %v555
    %v557 = vand.u32 %v556, 4294901760
    %558 = vmatpush1.msra.mxu0 %v557
    %559 = vmatprep.subr.mxu0 0.0
    %v560 = vand.u32 %v45, 4294901760
    %v561 = vsub.f32 %v45, %v560
    %v562 = vand.u32 %v561, 4294901760
    %563 = vmatpush1.msra.mxu0 %v562
    %564 = vmatprep.subr.mxu0 0.0
    %v565 = vand.u32 %v44, 4294901760
    %v566 = vsub.f32 %v44, %v565
    %v567 = vand.u32 %v566, 4294901760
    %568 = vmatpush1.msra.mxu0 %v567
    %569 = vmatprep.subr.mxu0 0.0
    %v570 = vand.u32 %v43, 4294901760
    %v571 = vsub.f32 %v43, %v570
    %v572 = vand.u32 %v571, 4294901760
    %573 = vmatpush1.msra.mxu0 %v572
    %574 = vmatprep.subr.mxu0 0.0
    %575 = vmatpush2.msra.mxu0 0.0
    %576 = vmatprep.subr.mxu0 0.0
    %577 = vmatpush2.msra.mxu0 0.0
    %578 = vmatprep.subr.mxu0 0.0
    %579 = vmatpush2.msra.mxu0 0.0
    %580 = vmatprep.subr.mxu0 0.0
    %581 = vmatpush2.msra.mxu0 0.0
    %582 = vmatprep.subr.mxu0 0.0
    %583 = vmatpush2.msra.mxu0 0.0
    %584 = vmatprep.subr.mxu0 0.0
    %585 = vmatpush2.msra.mxu0 0.0
    %586 = vmatprep.subr.mxu0 0.0
    %587 = vmatpush2.msra.mxu0 0.0
    %588 = vmatprep.subr.mxu0 0.0
    %589 = vmatpush2.msra.mxu0 0.0
    %590 = vmatprep.subr.mxu0 0.0
    %591 = vmatpush2.msra.mxu0 0.0
    %592 = vmatprep.subr.mxu0 0.0
    %593 = vmatpush2.msra.mxu0 0.0
    %594 = vmatprep.subr.mxu0 0.0
    %595 = vmatpush2.msra.mxu0 0.0
    %596 = vmatprep.subr.mxu0 0.0
    %597 = vmatpush2.msra.mxu0 0.0
    %598 = vmatprep.subr.mxu0 0.0
    %599 = vmatpush2.msra.mxu0 0.0
    %600 = vmatprep.subr.mxu0 0.0
    %601 = vmatpush2.msra.mxu0 0.0
    %602 = vmatprep.subr.mxu0 0.0
    %603 = vmatpush2.msra.mxu0 0.0
    %604 = vmatprep.subr.mxu0 0.0
    %605 = vmatpush2.msra.mxu0 0.0
    %606 = vmatprep.mubr.f32.mxu0 0.0
    %v607 = vand.u32 %v41, 4294901760
    %608 = vmatmul.mubr.f32.gmra.mxu0 %v607
    %v609 = vpop.f32.mrf.mxu0
    %v610 = vadd.f32 %v491, %v609
    %v611 = vpop.f32.mrf.mxu0
    %612 = vdwg.mxu0
    %613 = vmatprep.subr.mxu0 0.0
    %v614 = vand.u32 %v58, 4294901760
    %615 = vmatpush1.msra.mxu0 %v614
    %616 = vmatprep.subr.mxu0 0.0
    %v617 = vand.u32 %v57, 4294901760
    %618 = vmatpush1.msra.mxu0 %v617
    %619 = vmatprep.subr.mxu0 0.0
    %v620 = vand.u32 %v56, 4294901760
    %621 = vmatpush1.msra.mxu0 %v620
    %622 = vmatprep.subr.mxu0 0.0
    %v623 = vand.u32 %v55, 4294901760
    %624 = vmatpush1.msra.mxu0 %v623
    %625 = vmatprep.subr.mxu0 0.0
    %v626 = vand.u32 %v54, 4294901760
    %627 = vmatpush1.msra.mxu0 %v626
    %628 = vmatprep.subr.mxu0 0.0
    %v629 = vand.u32 %v53, 4294901760
    %630 = vmatpush1.msra.mxu0 %v629
    %631 = vmatprep.subr.mxu0 0.0
    %v632 = vand.u32 %v52, 4294901760
    %633 = vmatpush1.msra.mxu0 %v632
    %634 = vmatprep.subr.mxu0 0.0
    %v635 = vand.u32 %v51, 4294901760
    %636 = vmatpush1.msra.mxu0 %v635
    %637 = vmatprep.subr.mxu0 0.0
    %v638 = vand.u32 %v50, 4294901760
    %639 = vmatpush1.msra.mxu0 %v638
    %640 = vmatprep.subr.mxu0 0.0
    %v641 = vand.u32 %v49, 4294901760
    %642 = vmatpush1.msra.mxu0 %v641
    %643 = vmatprep.subr.mxu0 0.0
    %v644 = vand.u32 %v48, 4294901760
    %645 = vmatpush1.msra.mxu0 %v644
    %646 = vmatprep.subr.mxu0 0.0
    %v647 = vand.u32 %v47, 4294901760
    %648 = vmatpush1.msra.mxu0 %v647
    %649 = vmatprep.subr.mxu0 0.0
    %v650 = vand.u32 %v46, 4294901760
    %651 = vmatpush1.msra.mxu0 %v650
    %652 = vmatprep.subr.mxu0 0.0
    %v653 = vand.u32 %v45, 4294901760
    %654 = vmatpush1.msra.mxu0 %v653
    %655 = vmatprep.subr.mxu0 0.0
    %v656 = vand.u32 %v44, 4294901760
    %657 = vmatpush1.msra.mxu0 %v656
    %658 = vmatprep.subr.mxu0 0.0
    %v659 = vand.u32 %v43, 4294901760
    %660 = vmatpush1.msra.mxu0 %v659
    %661 = vmatprep.subr.mxu0 0.0
    %662 = vmatpush2.msra.mxu0 0.0
    %663 = vmatprep.subr.mxu0 0.0
    %664 = vmatpush2.msra.mxu0 0.0
    %665 = vmatprep.subr.mxu0 0.0
    %666 = vmatpush2.msra.mxu0 0.0
    %667 = vmatprep.subr.mxu0 0.0
    %668 = vmatpush2.msra.mxu0 0.0
    %669 = vmatprep.subr.mxu0 0.0
    %670 = vmatpush2.msra.mxu0 0.0
    %671 = vmatprep.subr.mxu0 0.0
    %672 = vmatpush2.msra.mxu0 0.0
    %673 = vmatprep.subr.mxu0 0.0
    %674 = vmatpush2.msra.mxu0 0.0
    %675 = vmatprep.subr.mxu0 0.0
    %676 = vmatpush2.msra.mxu0 0.0
    %677 = vmatprep.subr.mxu0 0.0
    %678 = vmatpush2.msra.mxu0 0.0
    %679 = vmatprep.subr.mxu0 0.0
    %680 = vmatpush2.msra.mxu0 0.0
    %681 = vmatprep.subr.mxu0 0.0
    %682 = vmatpush2.msra.mxu0 0.0
    %683 = vmatprep.subr.mxu0 0.0
    %684 = vmatpush2.msra.mxu0 0.0
    %685 = vmatprep.subr.mxu0 0.0
    %686 = vmatpush2.msra.mxu0 0.0
    %687 = vmatprep.subr.mxu0 0.0
    %688 = vmatpush2.msra.mxu0 0.0
    %689 = vmatprep.subr.mxu0 0.0
    %690 = vmatpush2.msra.mxu0 0.0
    %691 = vmatprep.subr.mxu0 0.0
    %692 = vmatpush2.msra.mxu0 0.0
    %693 = vmatprep.mubr.f32.mxu0 0.0
    %v694 = vand.u32 %v41, 4294901760
    %695 = vmatmul.mubr.f32.gmra.mxu0 %v694
    %v696 = vpop.f32.mrf.mxu0
    %v697 = vadd.f32 %v610, %v696
    %v698 = vpop.f32.mrf.mxu0
    %699 = vdwg.mxu0
    %v700 = vsub.f32 %v41, %v697
    %v701 = vmul.f32 %v700, %v700
    %702 = vmatprep.subr.mxu0 0.0
    %703 = vmatpush1.msra.mxu0 1.0
    %704 = vmatprep.subr.mxu0 0.0
    %705 = vmatpush1.msra.mxu0 1.0
    %706 = vmatprep.subr.mxu0 0.0
    %707 = vmatpush1.msra.mxu0 1.0
    %708 = vmatprep.subr.mxu0 0.0
    %709 = vmatpush1.msra.mxu0 1.0
    %710 = vmatprep.subr.mxu0 0.0
    %711 = vmatpush1.msra.mxu0 1.0
    %712 = vmatprep.subr.mxu0 0.0
    %713 = vmatpush1.msra.mxu0 1.0
    %714 = vmatprep.subr.mxu0 0.0
    %715 = vmatpush1.msra.mxu0 1.0
    %716 = vmatprep.subr.mxu0 0.0
    %717 = vmatpush1.msra.mxu0 1.0
    %718 = vmatprep.subr.mxu0 0.0
    %719 = vmatpush1.msra.mxu0 1.0
    %720 = vmatprep.subr.mxu0 0.0
    %721 = vmatpush1.msra.mxu0 1.0
    %722 = vmatprep.subr.mxu0 0.0
    %723 = vmatpush1.msra.mxu0 1.0
    %724 = vmatprep.subr.mxu0 0.0
    %725 = vmatpush1.msra.mxu0 1.0
    %726 = vmatprep.subr.mxu0 0.0
    %727 = vmatpush1.msra.mxu0 1.0
    %728 = vmatprep.subr.mxu0 0.0
    %729 = vmatpush1.msra.mxu0 1.0
    %730 = vmatprep.subr.mxu0 0.0
    %731 = vmatpush1.msra.mxu0 1.0
    %732 = vmatprep.subr.mxu0 0.0
    %733 = vmatpush1.msra.mxu0 1.0
    %734 = vmatprep.subr.mxu0 0.0
    %735 = vmatpush2.msra.mxu0 0.0
    %736 = vmatprep.subr.mxu0 0.0
    %737 = vmatpush2.msra.mxu0 0.0
    %738 = vmatprep.subr.mxu0 0.0
    %739 = vmatpush2.msra.mxu0 0.0
    %740 = vmatprep.subr.mxu0 0.0
    %741 = vmatpush2.msra.mxu0 0.0
    %742 = vmatprep.subr.mxu0 0.0
    %743 = vmatpush2.msra.mxu0 0.0
    %744 = vmatprep.subr.mxu0 0.0
    %745 = vmatpush2.msra.mxu0 0.0
    %746 = vmatprep.subr.mxu0 0.0
    %747 = vmatpush2.msra.mxu0 0.0
    %748 = vmatprep.subr.mxu0 0.0
    %749 = vmatpush2.msra.mxu0 0.0
    %750 = vmatprep.subr.mxu0 0.0
    %751 = vmatpush2.msra.mxu0 0.0
    %752 = vmatprep.subr.mxu0 0.0
    %753 = vmatpush2.msra.mxu0 0.0
    %754 = vmatprep.subr.mxu0 0.0
    %755 = vmatpush2.msra.mxu0 0.0
    %756 = vmatprep.subr.mxu0 0.0
    %757 = vmatpush2.msra.mxu0 0.0
    %758 = vmatprep.subr.mxu0 0.0
    %759 = vmatpush2.msra.mxu0 0.0
    %760 = vmatprep.subr.mxu0 0.0
    %761 = vmatpush2.msra.mxu0 0.0
    %762 = vmatprep.subr.mxu0 0.0
    %763 = vmatpush2.msra.mxu0 0.0
    %764 = vmatprep.subr.mxu0 0.0
    %765 = vmatpush2.msra.mxu0 0.0
    %766 = vmatprep.mubr.f32.mxu0 0.0
    %v767 = vand.u32 %v701, 4294901760
    %v768 = vsub.f32 %v701, %v767
    %v769 = vand.u32 %v768, 4294901760
    %v770 = vsub.f32 %v768, %v769
    %v771 = vand.u32 %v770, 4294901760
    %772 = vmatmul.mubr.f32.gmra.mxu0 %v771
    %v773 = vpop.f32.mrf.mxu0
    %v774 = vadd.f32 0.0, %v773
    %v775 = vpop.f32.mrf.mxu0
    %776 = vdwg.mxu0
    %777 = vmatprep.subr.mxu0 0.0
    %778 = vmatpush1.msra.mxu0 0.0
    %779 = vmatprep.subr.mxu0 0.0
    %780 = vmatpush1.msra.mxu0 0.0
    %781 = vmatprep.subr.mxu0 0.0
    %782 = vmatpush1.msra.mxu0 0.0
    %783 = vmatprep.subr.mxu0 0.0
    %784 = vmatpush1.msra.mxu0 0.0
    %785 = vmatprep.subr.mxu0 0.0
    %786 = vmatpush1.msra.mxu0 0.0
    %787 = vmatprep.subr.mxu0 0.0
    %788 = vmatpush1.msra.mxu0 0.0
    %789 = vmatprep.subr.mxu0 0.0
    %790 = vmatpush1.msra.mxu0 0.0
    %791 = vmatprep.subr.mxu0 0.0
    %792 = vmatpush1.msra.mxu0 0.0
    %793 = vmatprep.subr.mxu0 0.0
    %794 = vmatpush1.msra.mxu0 0.0
    %795 = vmatprep.subr.mxu0 0.0
    %796 = vmatpush1.msra.mxu0 0.0
    %797 = vmatprep.subr.mxu0 0.0
    %798 = vmatpush1.msra.mxu0 0.0
    %799 = vmatprep.subr.mxu0 0.0
    %800 = vmatpush1.msra.mxu0 0.0
    %801 = vmatprep.subr.mxu0 0.0
    %802 = vmatpush1.msra.mxu0 0.0
    %803 = vmatprep.subr.mxu0 0.0
    %804 = vmatpush1.msra.mxu0 0.0
    %805 = vmatprep.subr.mxu0 0.0
    %806 = vmatpush1.msra.mxu0 0.0
    %807 = vmatprep.subr.mxu0 0.0
    %808 = vmatpush1.msra.mxu0 0.0
    %809 = vmatprep.subr.mxu0 0.0
    %810 = vmatpush2.msra.mxu0 0.0
    %811 = vmatprep.subr.mxu0 0.0
    %812 = vmatpush2.msra.mxu0 0.0
    %813 = vmatprep.subr.mxu0 0.0
    %814 = vmatpush2.msra.mxu0 0.0
    %815 = vmatprep.subr.mxu0 0.0
    %816 = vmatpush2.msra.mxu0 0.0
    %817 = vmatprep.subr.mxu0 0.0
    %818 = vmatpush2.msra.mxu0 0.0
    %819 = vmatprep.subr.mxu0 0.0
    %820 = vmatpush2.msra.mxu0 0.0
    %821 = vmatprep.subr.mxu0 0.0
    %822 = vmatpush2.msra.mxu0 0.0
    %823 = vmatprep.subr.mxu0 0.0
    %824 = vmatpush2.msra.mxu0 0.0
    %825 = vmatprep.subr.mxu0 0.0
    %826 = vmatpush2.msra.mxu0 0.0
    %827 = vmatprep.subr.mxu0 0.0
    %828 = vmatpush2.msra.mxu0 0.0
    %829 = vmatprep.subr.mxu0 0.0
    %830 = vmatpush2.msra.mxu0 0.0
    %831 = vmatprep.subr.mxu0 0.0
    %832 = vmatpush2.msra.mxu0 0.0
    %833 = vmatprep.subr.mxu0 0.0
    %834 = vmatpush2.msra.mxu0 0.0
    %835 = vmatprep.subr.mxu0 0.0
    %836 = vmatpush2.msra.mxu0 0.0
    %837 = vmatprep.subr.mxu0 0.0
    %838 = vmatpush2.msra.mxu0 0.0
    %839 = vmatprep.subr.mxu0 0.0
    %840 = vmatpush2.msra.mxu0 0.0
    %841 = vmatprep.mubr.f32.mxu0 0.0
    %v842 = vand.u32 %v701, 4294901760
    %843 = vmatmul.mubr.f32.gmra.mxu0 %v842
    %v844 = vpop.f32.mrf.mxu0
    %v845 = vadd.f32 %v774, %v844
    %v846 = vpop.f32.mrf.mxu0
    %847 = vdwg.mxu0
    %848 = vmatprep.subr.mxu0 0.0
    %849 = vmatpush1.msra.mxu0 0.0
    %850 = vmatprep.subr.mxu0 0.0
    %851 = vmatpush1.msra.mxu0 0.0
    %852 = vmatprep.subr.mxu0 0.0
    %853 = vmatpush1.msra.mxu0 0.0
    %854 = vmatprep.subr.mxu0 0.0
    %855 = vmatpush1.msra.mxu0 0.0
    %856 = vmatprep.subr.mxu0 0.0
    %857 = vmatpush1.msra.mxu0 0.0
    %858 = vmatprep.subr.mxu0 0.0
    %859 = vmatpush1.msra.mxu0 0.0
    %860 = vmatprep.subr.mxu0 0.0
    %861 = vmatpush1.msra.mxu0 0.0
    %862 = vmatprep.subr.mxu0 0.0
    %863 = vmatpush1.msra.mxu0 0.0
    %864 = vmatprep.subr.mxu0 0.0
    %865 = vmatpush1.msra.mxu0 0.0
    %866 = vmatprep.subr.mxu0 0.0
    %867 = vmatpush1.msra.mxu0 0.0
    %868 = vmatprep.subr.mxu0 0.0
    %869 = vmatpush1.msra.mxu0 0.0
    %870 = vmatprep.subr.mxu0 0.0
    %871 = vmatpush1.msra.mxu0 0.0
    %872 = vmatprep.subr.mxu0 0.0
    %873 = vmatpush1.msra.mxu0 0.0
    %874 = vmatprep.subr.mxu0 0.0
    %875 = vmatpush1.msra.mxu0 0.0
    %876 = vmatprep.subr.mxu0 0.0
    %877 = vmatpush1.msra.mxu0 0.0
    %878 = vmatprep.subr.mxu0 0.0
    %879 = vmatpush1.msra.mxu0 0.0
    %880 = vmatprep.subr.mxu0 0.0
    %881 = vmatpush2.msra.mxu0 0.0
    %882 = vmatprep.subr.mxu0 0.0
    %883 = vmatpush2.msra.mxu0 0.0
    %884 = vmatprep.subr.mxu0 0.0
    %885 = vmatpush2.msra.mxu0 0.0
    %886 = vmatprep.subr.mxu0 0.0
    %887 = vmatpush2.msra.mxu0 0.0
    %888 = vmatprep.subr.mxu0 0.0
    %889 = vmatpush2.msra.mxu0 0.0
    %890 = vmatprep.subr.mxu0 0.0
    %891 = vmatpush2.msra.mxu0 0.0
    %892 = vmatprep.subr.mxu0 0.0
    %893 = vmatpush2.msra.mxu0 0.0
    %894 = vmatprep.subr.mxu0 0.0
    %895 = vmatpush2.msra.mxu0 0.0
    %896 = vmatprep.subr.mxu0 0.0
    %897 = vmatpush2.msra.mxu0 0.0
    %898 = vmatprep.subr.mxu0 0.0
    %899 = vmatpush2.msra.mxu0 0.0
    %900 = vmatprep.subr.mxu0 0.0
    %901 = vmatpush2.msra.mxu0 0.0
    %902 = vmatprep.subr.mxu0 0.0
    %903 = vmatpush2.msra.mxu0 0.0
    %904 = vmatprep.subr.mxu0 0.0
    %905 = vmatpush2.msra.mxu0 0.0
    %906 = vmatprep.subr.mxu0 0.0
    %907 = vmatpush2.msra.mxu0 0.0
    %908 = vmatprep.subr.mxu0 0.0
    %909 = vmatpush2.msra.mxu0 0.0
    %910 = vmatprep.subr.mxu0 0.0
    %911 = vmatpush2.msra.mxu0 0.0
    %912 = vmatprep.mubr.f32.mxu0 0.0
    %v913 = vand.u32 %v701, 4294901760
    %v914 = vsub.f32 %v701, %v913
    %915 = vmatmul.mubr.f32.gmra.mxu0 %v914
    %v916 = vpop.f32.mrf.mxu0
    %v917 = vadd.f32 %v845, %v916
    %v918 = vpop.f32.mrf.mxu0
    %919 = vdwg.mxu0
    %920 = vmatprep.subr.mxu0 0.0
    %921 = vmatpush1.msra.mxu0 1.0
    %922 = vmatprep.subr.mxu0 0.0
    %923 = vmatpush1.msra.mxu0 1.0
    %924 = vmatprep.subr.mxu0 0.0
    %925 = vmatpush1.msra.mxu0 1.0
    %926 = vmatprep.subr.mxu0 0.0
    %927 = vmatpush1.msra.mxu0 1.0
    %928 = vmatprep.subr.mxu0 0.0
    %929 = vmatpush1.msra.mxu0 1.0
    %930 = vmatprep.subr.mxu0 0.0
    %931 = vmatpush1.msra.mxu0 1.0
    %932 = vmatprep.subr.mxu0 0.0
    %933 = vmatpush1.msra.mxu0 1.0
    %934 = vmatprep.subr.mxu0 0.0
    %935 = vmatpush1.msra.mxu0 1.0
    %936 = vmatprep.subr.mxu0 0.0
    %937 = vmatpush1.msra.mxu0 1.0
    %938 = vmatprep.subr.mxu0 0.0
    %939 = vmatpush1.msra.mxu0 1.0
    %940 = vmatprep.subr.mxu0 0.0
    %941 = vmatpush1.msra.mxu0 1.0
    %942 = vmatprep.subr.mxu0 0.0
    %943 = vmatpush1.msra.mxu0 1.0
    %944 = vmatprep.subr.mxu0 0.0
    %945 = vmatpush1.msra.mxu0 1.0
    %946 = vmatprep.subr.mxu0 0.0
    %947 = vmatpush1.msra.mxu0 1.0
    %948 = vmatprep.subr.mxu0 0.0
    %949 = vmatpush1.msra.mxu0 1.0
    %950 = vmatprep.subr.mxu0 0.0
    %951 = vmatpush1.msra.mxu0 1.0
    %952 = vmatprep.subr.mxu0 0.0
    %953 = vmatpush2.msra.mxu0 0.0
    %954 = vmatprep.subr.mxu0 0.0
    %955 = vmatpush2.msra.mxu0 0.0
    %956 = vmatprep.subr.mxu0 0.0
    %957 = vmatpush2.msra.mxu0 0.0
    %958 = vmatprep.subr.mxu0 0.0
    %959 = vmatpush2.msra.mxu0 0.0
    %960 = vmatprep.subr.mxu0 0.0
    %961 = vmatpush2.msra.mxu0 0.0
    %962 = vmatprep.subr.mxu0 0.0
    %963 = vmatpush2.msra.mxu0 0.0
    %964 = vmatprep.subr.mxu0 0.0
    %965 = vmatpush2.msra.mxu0 0.0
    %966 = vmatprep.subr.mxu0 0.0
    %967 = vmatpush2.msra.mxu0 0.0
    %968 = vmatprep.subr.mxu0 0.0
    %969 = vmatpush2.msra.mxu0 0.0
    %970 = vmatprep.subr.mxu0 0.0
    %971 = vmatpush2.msra.mxu0 0.0
    %972 = vmatprep.subr.mxu0 0.0
    %973 = vmatpush2.msra.mxu0 0.0
    %974 = vmatprep.subr.mxu0 0.0
    %975 = vmatpush2.msra.mxu0 0.0
    %976 = vmatprep.subr.mxu0 0.0
    %977 = vmatpush2.msra.mxu0 0.0
    %978 = vmatprep.subr.mxu0 0.0
    %979 = vmatpush2.msra.mxu0 0.0
    %980 = vmatprep.subr.mxu0 0.0
    %981 = vmatpush2.msra.mxu0 0.0
    %982 = vmatprep.subr.mxu0 0.0
    %983 = vmatpush2.msra.mxu0 0.0
    %984 = vmatprep.mubr.f32.mxu0 0.0
    %v985 = vand.u32 %v701, 4294901760
    %v986 = vsub.f32 %v701, %v985
    %v987 = vand.u32 %v986, 4294901760
    %988 = vmatmul.mubr.f32.gmra.mxu0 %v987
    %v989 = vpop.f32.mrf.mxu0
    %v990 = vadd.f32 %v917, %v989
    %v991 = vpop.f32.mrf.mxu0
    %992 = vdwg.mxu0
    %993 = vmatprep.subr.mxu0 0.0
    %994 = vmatpush1.msra.mxu0 0.0
    %995 = vmatprep.subr.mxu0 0.0
    %996 = vmatpush1.msra.mxu0 0.0
    %997 = vmatprep.subr.mxu0 0.0
    %998 = vmatpush1.msra.mxu0 0.0
    %999 = vmatprep.subr.mxu0 0.0
    %1000 = vmatpush1.msra.mxu0 0.0
    %1001 = vmatprep.subr.mxu0 0.0
    %1002 = vmatpush1.msra.mxu0 0.0
    %1003 = vmatprep.subr.mxu0 0.0
    %1004 = vmatpush1.msra.mxu0 0.0
    %1005 = vmatprep.subr.mxu0 0.0
    %1006 = vmatpush1.msra.mxu0 0.0
    %1007 = vmatprep.subr.mxu0 0.0
    %1008 = vmatpush1.msra.mxu0 0.0
    %1009 = vmatprep.subr.mxu0 0.0
    %1010 = vmatpush1.msra.mxu0 0.0
    %1011 = vmatprep.subr.mxu0 0.0
    %1012 = vmatpush1.msra.mxu0 0.0
    %1013 = vmatprep.subr.mxu0 0.0
    %1014 = vmatpush1.msra.mxu0 0.0
    %1015 = vmatprep.subr.mxu0 0.0
    %1016 = vmatpush1.msra.mxu0 0.0
    %1017 = vmatprep.subr.mxu0 0.0
    %1018 = vmatpush1.msra.mxu0 0.0
    %1019 = vmatprep.subr.mxu0 0.0
    %1020 = vmatpush1.msra.mxu0 0.0
    %1021 = vmatprep.subr.mxu0 0.0
    %1022 = vmatpush1.msra.mxu0 0.0
    %1023 = vmatprep.subr.mxu0 0.0
    %1024 = vmatpush1.msra.mxu0 0.0
    %1025 = vmatprep.subr.mxu0 0.0
    %1026 = vmatpush2.msra.mxu0 0.0
    %1027 = vmatprep.subr.mxu0 0.0
    %1028 = vmatpush2.msra.mxu0 0.0
    %1029 = vmatprep.subr.mxu0 0.0
    %1030 = vmatpush2.msra.mxu0 0.0
    %1031 = vmatprep.subr.mxu0 0.0
    %1032 = vmatpush2.msra.mxu0 0.0
    %1033 = vmatprep.subr.mxu0 0.0
    %1034 = vmatpush2.msra.mxu0 0.0
    %1035 = vmatprep.subr.mxu0 0.0
    %1036 = vmatpush2.msra.mxu0 0.0
    %1037 = vmatprep.subr.mxu0 0.0
    %1038 = vmatpush2.msra.mxu0 0.0
    %1039 = vmatprep.subr.mxu0 0.0
    %1040 = vmatpush2.msra.mxu0 0.0
    %1041 = vmatprep.subr.mxu0 0.0
    %1042 = vmatpush2.msra.mxu0 0.0
    %1043 = vmatprep.subr.mxu0 0.0
    %1044 = vmatpush2.msra.mxu0 0.0
    %1045 = vmatprep.subr.mxu0 0.0
    %1046 = vmatpush2.msra.mxu0 0.0
    %1047 = vmatprep.subr.mxu0 0.0
    %1048 = vmatpush2.msra.mxu0 0.0
    %1049 = vmatprep.subr.mxu0 0.0
    %1050 = vmatpush2.msra.mxu0 0.0
    %1051 = vmatprep.subr.mxu0 0.0
    %1052 = vmatpush2.msra.mxu0 0.0
    %1053 = vmatprep.subr.mxu0 0.0
    %1054 = vmatpush2.msra.mxu0 0.0
    %1055 = vmatprep.subr.mxu0 0.0
    %1056 = vmatpush2.msra.mxu0 0.0
    %1057 = vmatprep.mubr.f32.mxu0 0.0
    %v1058 = vand.u32 %v701, 4294901760
    %1059 = vmatmul.mubr.f32.gmra.mxu0 %v1058
    %v1060 = vpop.f32.mrf.mxu0
    %v1061 = vadd.f32 %v990, %v1060
    %v1062 = vpop.f32.mrf.mxu0
    %1063 = vdwg.mxu0
    %1064 = vmatprep.subr.mxu0 0.0
    %1065 = vmatpush1.msra.mxu0 1.0
    %1066 = vmatprep.subr.mxu0 0.0
    %1067 = vmatpush1.msra.mxu0 1.0
    %1068 = vmatprep.subr.mxu0 0.0
    %1069 = vmatpush1.msra.mxu0 1.0
    %1070 = vmatprep.subr.mxu0 0.0
    %1071 = vmatpush1.msra.mxu0 1.0
    %1072 = vmatprep.subr.mxu0 0.0
    %1073 = vmatpush1.msra.mxu0 1.0
    %1074 = vmatprep.subr.mxu0 0.0
    %1075 = vmatpush1.msra.mxu0 1.0
    %1076 = vmatprep.subr.mxu0 0.0
    %1077 = vmatpush1.msra.mxu0 1.0
    %1078 = vmatprep.subr.mxu0 0.0
    %1079 = vmatpush1.msra.mxu0 1.0
    %1080 = vmatprep.subr.mxu0 0.0
    %1081 = vmatpush1.msra.mxu0 1.0
    %1082 = vmatprep.subr.mxu0 0.0
    %1083 = vmatpush1.msra.mxu0 1.0
    %1084 = vmatprep.subr.mxu0 0.0
    %1085 = vmatpush1.msra.mxu0 1.0
    %1086 = vmatprep.subr.mxu0 0.0
    %1087 = vmatpush1.msra.mxu0 1.0
    %1088 = vmatprep.subr.mxu0 0.0
    %1089 = vmatpush1.msra.mxu0 1.0
    %1090 = vmatprep.subr.mxu0 0.0
    %1091 = vmatpush1.msra.mxu0 1.0
    %1092 = vmatprep.subr.mxu0 0.0
    %1093 = vmatpush1.msra.mxu0 1.0
    %1094 = vmatprep.subr.mxu0 0.0
    %1095 = vmatpush1.msra.mxu0 1.0
    %1096 = vmatprep.subr.mxu0 0.0
    %1097 = vmatpush2.msra.mxu0 0.0
    %1098 = vmatprep.subr.mxu0 0.0
    %1099 = vmatpush2.msra.mxu0 0.0
    %1100 = vmatprep.subr.mxu0 0.0
    %1101 = vmatpush2.msra.mxu0 0.0
    %1102 = vmatprep.subr.mxu0 0.0
    %1103 = vmatpush2.msra.mxu0 0.0
    %1104 = vmatprep.subr.mxu0 0.0
    %1105 = vmatpush2.msra.mxu0 0.0
    %1106 = vmatprep.subr.mxu0 0.0
    %1107 = vmatpush2.msra.mxu0 0.0
    %1108 = vmatprep.subr.mxu0 0.0
    %1109 = vmatpush2.msra.mxu0 0.0
    %1110 = vmatprep.subr.mxu0 0.0
    %1111 = vmatpush2.msra.mxu0 0.0
    %1112 = vmatprep.subr.mxu0 0.0
    %1113 = vmatpush2.msra.mxu0 0.0
    %1114 = vmatprep.subr.mxu0 0.0
    %1115 = vmatpush2.msra.mxu0 0.0
    %1116 = vmatprep.subr.mxu0 0.0
    %1117 = vmatpush2.msra.mxu0 0.0
    %1118 = vmatprep.subr.mxu0 0.0
    %1119 = vmatpush2.msra.mxu0 0.0
    %1120 = vmatprep.subr.mxu0 0.0
    %1121 = vmatpush2.msra.mxu0 0.0
    %1122 = vmatprep.subr.mxu0 0.0
    %1123 = vmatpush2.msra.mxu0 0.0
    %1124 = vmatprep.subr.mxu0 0.0
    %1125 = vmatpush2.msra.mxu0 0.0
    %1126 = vmatprep.subr.mxu0 0.0
    %1127 = vmatpush2.msra.mxu0 0.0
    %1128 = vmatprep.mubr.f32.mxu0 0.0
    %v1129 = vand.u32 %v701, 4294901760
    %1130 = vmatmul.mubr.f32.gmra.mxu0 %v1129
    %v1131 = vpop.f32.mrf.mxu0
    %v1132 = vadd.f32 %v1061, %v1131
    %v1133 = vpop.f32.mrf.mxu0
    %1134 = vdwg.mxu0
    %v1135 = vmul.f32 %v1132, 0.03125
    %v1136 = vadd.f32 %v1135, 1e-05
    %v1137 = vrsqrt.pop %v1136
    %v1139 = vlaneseq
    %v1140 = vshrl.u32 %v1139, 7
    %v1141 = vsub.s32 0, %v1140
    %v1142 = vrot.slane %v42, %v1141
    %v1144 = vmul.f32 %v1137, %v1142
    %v1145 = vmul.f32 %v700, %v1144
    %1146 = vst [vmem:[#allocation7] sm:$0x3] %v1145
    // Predicated region
    $region22: #{tpu_custom_call.1} parent=1 // pred_check
      _
    $region23: #{tpu_custom_call.1} parent=1 // pred_check_branch
      %1148 = sbr.rel (0) target = $region25
    $region24: #{tpu_custom_call.1} parent=1 // pred_region
      %s1150 = ssub.s32 32, 32
      %1151 = vsyncadd [#allocation4], %s1150
      %s1153 = sshll.u32 [#allocation7], 4
      %s1154 = int_to_ptr.vmem [resolvable:$true] %s1153
      %1156 = dma.vmem_to_hbm [thread:$0]  %s1154, 32, %s3, [#allocation4]
    $region25: #{tpu_custom_call.1} parent=1 // pred_fallthru
      _
    // Predicated region
    $region26: #{tpu_custom_call.1} parent=1 // pred_check
      _
    $region27: #{tpu_custom_call.1} parent=1 // pred_check_branch
      %1158 = sbr.rel (0) target = $region29
    $region28: #{tpu_custom_call.1} parent=1 // pred_region
      %1159 = dma.done [#allocation4], 32
    $region29: #{tpu_custom_call.1} parent=1 // pred_fallthru
      _
    %1160 = vsyncpa [#allocation3], 1
    %1161 = vsyncpa [#allocation6], 1
    %1162 = vsyncpa [#allocation4], 1

</llo_original>
